<compile_context>
chip_gen: v5e
topology: v5e:2x2
jax: 0.10.0
libtpu: 0.0.40
codegen_flags: <defaults>
</compile_context>

<pallas_src>
import functools

import jax
import jax.numpy as jnp
from jax import lax
from jax.experimental import pallas as pl
from jax.experimental.pallas import tpu as pltpu


_NEG_BIG = -1e30          # finite mask floor for the online softmax


def _round_up(x, m):
    return ((x + m - 1) // m) * m


def _pad_rows(n):
    """Padded node count: 16-aligned below 512 (so an even 2-way row split
    stays 8-aligned), 256-aligned above (padding waste <= 255 rows)."""
    return _round_up(n, 16) if n <= 512 else _round_up(n, 256)


def _row_tile(n_pad):
    """Row (sublane) tile for [N, C] arrays / adj dst axis: mult of 8 or full."""
    if n_pad <= 256:
        return n_pad
    if n_pad <= 512:
        return n_pad // 2                 # >=2 "parallel" blocks -> dual-TC
    return 512 if n_pad % 512 == 0 else 256


def _lane_tile(n_pad):
    """Adjacency source (lane) tile: multiple of 128 or the full axis."""
    if n_pad <= 512:
        return n_pad
    return 512 if n_pad % 512 == 0 else 256


@functools.lru_cache(maxsize=None)
def _vmem_limit():
    """Generation-aware scoped-VMEM budget (~0.75x physical VMEM)."""
    try:
        return int(pltpu.get_tpu_info().vmem_capacity_bytes * 3 // 4)
    except Exception:                                    # noqa: BLE001
        return 48 * 1024 * 1024


@functools.lru_cache(maxsize=None)
def _use_bf16_exp():
    """bf16 EUP exp only on v6e / v7x (v5e and older lack bf16 EUP/VPU)."""
    try:
        kind = jax.devices()[0].device_kind.lower()
        return ("v6" in kind) or ("v7" in kind)
    except Exception:                                    # noqa: BLE001
        return False


# ----------------------------------------------------------------------------
# Kernel 1: row-tiled linear projection  y = x @ W + b   (bf16 MXU, f32 accum)
# W is pre-cast to bf16 in the wrapper; output is stored bf16 (halves HBM).
# ----------------------------------------------------------------------------
def _linear_kernel(x_ref, w_ref, b_ref, o_ref):
    x = x_ref[...].astype(jnp.bfloat16)
    y = jnp.dot(x, w_ref[...], preferred_element_type=jnp.float32) + b_ref[...]
    o_ref[...] = y.astype(o_ref.dtype)


def pallas_linear(x, w, b):
    n, fin = x.shape
    fout = w.shape[1]
    tr = _row_tile(n)
    assert n % tr == 0
    return pl.pallas_call(
        _linear_kernel,
        out_shape=jax.ShapeDtypeStruct((n, fout), jnp.bfloat16),
        grid=(n // tr,),
        in_specs=[
            pl.BlockSpec((tr, fin), lambda i: (i, 0)),
            pl.BlockSpec((fin, fout), lambda i: (0, 0)),
            pl.BlockSpec((1, fout), lambda i: (0, 0)),
        ],
        out_specs=pl.BlockSpec((tr, fout), lambda i: (i, 0)),
        compiler_params=pltpu.CompilerParams(
            dimension_semantics=("parallel",),
            vmem_limit_bytes=_vmem_limit()),
    )(x, w.astype(jnp.bfloat16), b.reshape(1, fout))


# ----------------------------------------------------------------------------
# Kernel 2: per-edge-type node-level attention (flash-style online softmax)
#   x_src:[Ns,C] bf16  x_dst:[Nd,C] bf16  att_*_bd: block-diagonal attn mats
#   adj:[Nd,Ns] int8   counts: per-(i,j)-tile nonzero counts (scalar prefetch)
#   grid = (Nd tiles "parallel", Ns tiles "arbitrary") -> out [Nd, C] bf16
# ----------------------------------------------------------------------------
def _edge_attn_kernel(cnt_ref, xs_ref, xd_ref, asrc_ref, adst_ref, adj_ref,
                      o_ref, m_sc, l_sc, acc_sc, adst_sc, *,
                      heads, head_dim, negative_slope, exp_dtype):
    H, D = heads, head_dim
    ks = pl.program_id(1)
    nbs = pl.num_programs(1)
    cnt = cnt_ref[pl.program_id(0) * nbs + ks]

    @pl.when(ks == 0)
    def _init():
        m_sc[...] = jnp.full_like(m_sc, _NEG_BIG)
        l_sc[...] = jnp.zeros_like(l_sc)
        acc_sc[...] = jnp.zeros_like(acc_sc)
        # a_dst computed once per destination tile (reused for every src tile)
        adst_sc[...] = jnp.dot(xd_ref[...], adst_ref[...],
                               preferred_element_type=jnp.float32)   # [TD, H]

    @pl.when(cnt > 0)                       # skip tiles with no edges entirely
    def _step():
        xs = xs_ref[...]                                      # [TS, C] bf16
        mask_b = adj_ref[...] != 0                            # [TD, TS] bool
        mask_c = mask_b.astype(exp_dtype)
        # one MXU push per tile: a_src[h, s] = att_src[h] . xs[s, head-h slice]
        a_src = lax.dot_general(asrc_ref[...], xs, (((1,), (1,)), ((), ())),
                                preferred_element_type=jnp.float32)  # [H, TS]
        a_dst = adst_sc[...]                                  # [TD, H] f32

        m_all = m_sc[...]                                     # [TD, H]
        l_all = l_sc[...]                                     # [TD, H]
        acc_all = acc_sc[...]                                 # [TD, C]

        m_out, l_out, acc_out = [], [], []
        for h in range(H):                                    # static unroll
            sl = slice(h * D, (h + 1) * D)
            logit = a_dst[:, h:h + 1] + a_src[h:h + 1, :]     # [TD, TS] f32
            logit = jnp.where(logit >= 0, logit, negative_slope * logit)
            logit = jnp.where(mask_b, logit, _NEG_BIG)        # masked, finite

            m_prev = m_all[:, h:h + 1]
            m_new = jnp.maximum(m_prev, jnp.max(logit, axis=-1, keepdims=True))
            p = jnp.exp((logit - m_new).astype(exp_dtype)) * mask_c
            scale = jnp.exp(m_prev - m_new)                   # [TD, 1] f32

            m_out.append(m_new)
            l_out.append(scale * l_all[:, h:h + 1] +
                         jnp.sum(p.astype(jnp.float32), axis=-1, keepdims=True))
            acc_out.append(scale * acc_all[:, sl] +
                           jnp.dot(p.astype(jnp.bfloat16), xs[:, sl],
                                   preferred_element_type=jnp.float32))

        # single lane-dense stores (no per-head masked read-modify-writes)
        m_sc[...] = jnp.concatenate(m_out, axis=1)
        l_sc[...] = jnp.concatenate(l_out, axis=1)
        acc_sc[...] = jnp.concatenate(acc_out, axis=1)

    @pl.when(ks == nbs - 1)
    def _finish():
        # zero in-degree (and padded) rows: l == 0 -> output 0 (matches PyG)
        l = jnp.maximum(l_sc[...], jnp.float32(1e-20))        # [TD, H]
        acc = acc_sc[...]
        pieces = [jnp.maximum(acc[:, h * D:(h + 1) * D] / l[:, h:h + 1], 0.0)
                  for h in range(H)]
        o_ref[...] = jnp.concatenate(pieces, axis=-1).astype(o_ref.dtype)


def pallas_edge_attention(x_src, x_dst, att_src, att_dst, adj, counts,
                          heads, head_dim, negative_slope=0.2):
    ns_pad, c = x_src.shape
    nd_pad, _ = x_dst.shape
    assert c == heads * head_dim
    ts = _lane_tile(ns_pad)
    td = _row_tile(nd_pad)
    assert ns_pad % ts == 0 and nd_pad % td == 0
    assert counts.shape[0] == (nd_pad // td) * (ns_pad // ts)

    # Block-diagonal attention matrices (tiny, built once per call in XLA).
    eye = jnp.eye(heads, dtype=jnp.float32)
    att_src_bd = (att_src[:, None, :] * eye[:, :, None]).reshape(heads, c)
    att_dst_bd = (att_dst[:, None, :] * eye[:, :, None]).reshape(heads, c).T
    att_src_bd = att_src_bd.astype(jnp.bfloat16)              # [H, C]
    att_dst_bd = att_dst_bd.astype(jnp.bfloat16)               # [C, H]

    exp_dtype = jnp.bfloat16 if _use_bf16_exp() else jnp.float32
    kernel = functools.partial(_edge_attn_kernel, heads=heads,
                               head_dim=head_dim,
                               negative_slope=negative_slope,
                               exp_dtype=exp_dtype)
    grid_spec = pltpu.PrefetchScalarGridSpec(
        num_scalar_prefetch=1,
        grid=(nd_pad // td, ns_pad // ts),
        in_specs=[
            pl.BlockSpec((ts, c), lambda i, j, cnt: (j, 0)),        # x_src
            pl.BlockSpec((td, c), lambda i, j, cnt: (i, 0)),        # x_dst
            pl.BlockSpec((heads, c), lambda i, j, cnt: (0, 0)),     # att_src_bd
            pl.BlockSpec((c, heads), lambda i, j, cnt: (0, 0)),     # att_dst_bd
            pl.BlockSpec((td, ts), lambda i, j, cnt: (i, j)),       # adj (int8)
        ],
        out_specs=pl.BlockSpec((td, c), lambda i, j, cnt: (i, 0)),
        scratch_shapes=[
            pltpu.VMEM((td, heads), jnp.float32),   # running max
            pltpu.VMEM((td, heads), jnp.float32),   # running denom
            pltpu.VMEM((td, c), jnp.float32),       # output accumulator
            pltpu.VMEM((td, heads), jnp.float32),   # cached a_dst
        ],
    )
    return pl.pallas_call(
        kernel,
        out_shape=jax.ShapeDtypeStruct((nd_pad, c), jnp.bfloat16),
        grid_spec=grid_spec,
        compiler_params=pltpu.CompilerParams(
            dimension_semantics=("parallel", "arbitrary"),
            vmem_limit_bytes=_vmem_limit()),
    )(counts, x_src, x_dst, att_src_bd, att_dst_bd, adj)


# ----------------------------------------------------------------------------
# Kernel 3a: semantic-attention weights.  For each edge type t:
#   score_t = q . mean_n tanh(k_lin(x_t[n]));  output = softmax_t(score)
# T per-edge-type arrays are separate inputs (no jnp.stack HBM materialization);
# tiled over nodes ("arbitrary"), softmax applied once in the finish block.
# ----------------------------------------------------------------------------
def _semantic_score_kernel(*refs, n_real, tile, num_types):
    x_refs = refs[:num_types]
    kw_ref, kb_ref, q_ref, s_ref = refs[num_types:num_types + 4]
    i = pl.program_id(0)

    @pl.when(i == 0)
    def _init():
        s_ref[...] = jnp.zeros_like(s_ref)

    # mask padded rows (zero features, but tanh(bias) != 0)
    row = i * tile + lax.broadcasted_iota(jnp.int32, (tile, 1), 0)    # [TN, 1]
    valid = (row < n_real).astype(jnp.float32)

    kw = kw_ref[...]                                   # [C, C] bf16
    kb = kb_ref[...]                                   # [1, C] f32
    q = q_ref[...]                                     # [1, C] f32
    contribs = []
    for t in range(num_types):                         # static unroll, T small
        x = x_refs[t][...]                             # [TN, C] bf16
        k = jnp.dot(x, kw, preferred_element_type=jnp.float32) + kb
        k = jnp.tanh(k)
        ct = jnp.sum(k * q, axis=-1, keepdims=True) * valid          # [TN, 1]
        contribs.append(jnp.sum(ct, axis=0, keepdims=True))          # [1, 1]
    s_ref[...] += jnp.concatenate(contribs, axis=0)                   # [T, 1]

    @pl.when(i == pl.num_programs(0) - 1)
    def _finish():
        s = s_ref[...] * (1.0 / n_real)                # mean over real nodes
        s = s - jnp.max(s, axis=0, keepdims=True)
        e = jnp.exp(s)
        s_ref[...] = e / jnp.sum(e, axis=0, keepdims=True)   # softmax over T


def pallas_semantic_scores(xs_list, k_w, k_b, q, n_real):
    t = len(xs_list)
    n_pad, c = xs_list[0].shape
    tn = _row_tile(n_pad)
    assert n_pad % tn == 0
    kernel = functools.partial(_semantic_score_kernel, n_real=n_real,
                               tile=tn, num_types=t)
    in_specs = ([pl.BlockSpec((tn, c), lambda i: (i, 0)) for _ in range(t)] +
                [pl.BlockSpec((c, c), lambda i: (0, 0)),
                 pl.BlockSpec((1, c), lambda i: (0, 0)),
                 pl.BlockSpec((1, c), lambda i: (0, 0))])
    return pl.pallas_call(
        kernel,
        out_shape=jax.ShapeDtypeStruct((t, 1), jnp.float32),
        grid=(n_pad // tn,),
        in_specs=in_specs,
        out_specs=pl.BlockSpec((t, 1), lambda i: (0, 0)),
        compiler_params=pltpu.CompilerParams(
            dimension_semantics=("arbitrary",),
            vmem_limit_bytes=_vmem_limit()),
    )(*xs_list, k_w.astype(jnp.bfloat16), k_b.reshape(1, c), q)


# ----------------------------------------------------------------------------
# Kernel 3b: semantic-attention combine (+ optional fused ELU), tiled over
# nodes; attention weights are already softmax-normalized scalars per type.
# ----------------------------------------------------------------------------
def _semantic_combine_kernel(*refs, num_types, apply_elu):
    x_refs = refs[:num_types]
    attn_ref = refs[num_types]
    o_ref = refs[num_types + 1]
    a = attn_ref[...]                                        # [T, 1] f32
    acc = a[0:1, 0:1] * x_refs[0][...].astype(jnp.float32)   # [TN, C]
    for t in range(1, num_types):
        acc = acc + a[t:t + 1, 0:1] * x_refs[t][...].astype(jnp.float32)
    if apply_elu:   # ELU between the two HAN layers, fused here
        acc = jnp.where(acc > 0, acc, jnp.expm1(jnp.minimum(acc, 0.0)))
    o_ref[...] = acc.astype(o_ref.dtype)


def pallas_semantic_combine(xs_list, attn, apply_elu, out_dtype):
    t = len(xs_list)
    n_pad, c = xs_list[0].shape
    tn = _row_tile(n_pad)
    assert n_pad % tn == 0
    kernel = functools.partial(_semantic_combine_kernel, num_types=t,
                               apply_elu=apply_elu)
    in_specs = ([pl.BlockSpec((tn, c), lambda i: (i, 0)) for _ in range(t)] +
                [pl.BlockSpec((t, 1), lambda i: (0, 0))])
    return pl.pallas_call(
        kernel,
        out_shape=jax.ShapeDtypeStruct((n_pad, c), out_dtype),
        grid=(n_pad // tn,),
        in_specs=in_specs,
        out_specs=pl.BlockSpec((tn, c), lambda i: (i, 0)),
        compiler_params=pltpu.CompilerParams(
            dimension_semantics=("parallel",),
            vmem_limit_bytes=_vmem_limit()),
    )(*xs_list, attn)


# ----------------------------------------------------------------------------
# HANConv layer / HAN forward (plain-JAX glue orchestrating the kernels).
# All node arrays flow padded; padded rows are provably zero after each layer
# (masked out of attention / means) and are sliced off at the end.
# ----------------------------------------------------------------------------
def han_conv_layer(params, x_dict, edge_aux, n_true, metadata, heads,
                   out_channels, apply_elu, out_dtype):
    node_types, edge_types = metadata
    d = out_channels // heads

    # node-type projections, lane-dense [N_pad, C] bf16 (heads in lanes)
    x_proj = {nt: pallas_linear(x_dict[nt], params["proj"][nt]["w"],
                                params["proj"][nt]["b"]) for nt in node_types}

    # edge-type attention + add-aggregation + relu
    out_dict = {nt: [] for nt in node_types}
    for et in edge_types:
        src, _, dst = et
        name = "__".join(et)
        adj_i8, counts = edge_aux[et]
        o = pallas_edge_attention(x_proj[src], x_proj[dst],
                                  params["att_src"][name],
                                  params["att_dst"][name],
                                  adj_i8, counts, heads, d)    # [Nd_pad, C]
        out_dict[dst].append(o)

    # semantic attention over edge types targeting each node type
    # TODO(synk): node types that are not the destination of any edge type
    #             return None in PyG; not handled (not needed here).
    res = {}
    for nt in node_types:
        outs = out_dict[nt]
        attn = pallas_semantic_scores(outs, params["k_lin_w"],
                                      params["k_lin_b"], params["q"],
                                      n_true[nt])
        res[nt] = pallas_semantic_combine(outs, attn, apply_elu, out_dtype)
    return res


def han_forward(params, x_dict, adj_dict, metadata, out_channels,
                heads1, heads2):
    node_types, edge_types = metadata
    n_true = {nt: x_dict[nt].shape[0] for nt in node_types}
    n_pad = {nt: _pad_rows(n) for nt, n in n_true.items()}

    x_pad = {nt: jnp.pad(x, ((0, n_pad[nt] - n_true[nt]), (0, 0)))
             .astype(jnp.bfloat16) for nt, x in x_dict.items()}

    # Pad + int8-encode adjacency once; per-tile edge counts computed once and
    # reused by both HANConv layers (tile skipping for sparse graphs).
    edge_aux = {}
    for et in edge_types:
        src, _, dst = et
        a = adj_dict[et]
        a_pad = jnp.pad(
            a, ((0, n_pad[dst] - a.shape[0]), (0, n_pad[src] - a.shape[1])))
        nonz = (a_pad != 0)
        td = _row_tile(n_pad[dst])
        ts = _lane_tile(n_pad[src])
        nbd, nbs = n_pad[dst] // td, n_pad[src] // ts
        counts = nonz.astype(jnp.int32).reshape(nbd, td, nbs, ts)
        counts = counts.sum(axis=(1, 3)).reshape(-1)
        edge_aux[et] = (nonz.astype(jnp.int8), counts)

    h = han_conv_layer(params["conv1"], x_pad, edge_aux, n_true, metadata,
                       heads1, out_channels, apply_elu=True,
                       out_dtype=jnp.bfloat16)                  # conv1 + ELU
    h = han_conv_layer(params["conv2"], h, edge_aux, n_true, metadata,
                       heads2, out_channels, apply_elu=False,
                       out_dtype=jnp.float32)                   # conv2
    return {nt: h[nt][: n_true[nt]] for nt in node_types}


# ----------------------------------------------------------------------------
# Deterministic parameter initialization
# ----------------------------------------------------------------------------
def _normal(key, shape, scale=0.1):
    return scale * jax.random.normal(key, shape, dtype=jnp.float32)


def init_hanconv_params(key, in_ch, out_ch, heads, metadata):
    node_types, edge_types = metadata
    d = out_ch // heads
    counter = [0]

    def nk():
        counter[0] += 1
        return jax.random.fold_in(key, counter[0])

    p = {"proj": {}, "att_src": {}, "att_dst": {}}
    for nt in node_types:
        p["proj"][nt] = {"w": _normal(nk(), (in_ch[nt], out_ch)),
                         "b": _normal(nk(), (out_ch,))}
    for et in edge_types:
        name = "__".join(et)
        p["att_src"][name] = _normal(nk(), (heads, d))
        p["att_dst"][name] = _normal(nk(), (heads, d))
    p["k_lin_w"] = _normal(nk(), (out_ch, out_ch))
    p["k_lin_b"] = _normal(nk(), (out_ch,))
    p["q"] = _normal(nk(), (1, out_ch))
    return p


# ----------------------------------------------------------------------------
if __name__ == "__main__":
    # metadata: 2 node types, 2 edge types (each node type is a destination)
    metadata = (
        ["author", "paper"],
        [("author", "writes", "paper"), ("paper", "rev_writes", "author")],
    )
    in_channels = 16
    out_channels = 32
    heads1, heads2 = 4, 4
    n_author, n_paper = 8, 12

    key = jax.random.PRNGKey(0)
    kx1, kx2, ka1, ka2 = jax.random.split(key, 4)
    x_dict = {
        "author": jax.random.normal(kx1, (n_author, in_channels), jnp.float32),
        "paper": jax.random.normal(kx2, (n_paper, in_channels), jnp.float32),
    }
    # edge_index_dict represented as dense adjacency masks adj[dst, src]
    adj_dict = {
        ("author", "writes", "paper"):
            (jax.random.uniform(ka1, (n_paper, n_author)) < 0.4)
            .astype(jnp.float32),
        ("paper", "rev_writes", "author"):
            (jax.random.uniform(ka2, (n_author, n_paper)) < 0.4)
            .astype(jnp.float32),
    }

    pkey = jax.random.PRNGKey(1)
    params = {
        "conv1": init_hanconv_params(
            jax.random.fold_in(pkey, 1),
            {"author": in_channels, "paper": in_channels},
            out_channels, heads1, metadata),
        "conv2": init_hanconv_params(
            jax.random.fold_in(pkey, 2),
            {"author": out_channels, "paper": out_channels},
            out_channels, heads2, metadata),
    }

    out = han_forward(params, x_dict, adj_dict, metadata, out_channels,
                      heads1, heads2)
    out = {k: jax.block_until_ready(v) for k, v in out.items()}

    assert out["author"].shape == (n_author, out_channels)
    assert out["paper"].shape == (n_paper, out_channels)
    assert all(bool(jnp.all(jnp.isfinite(v))) for v in out.values())
    print("KERNEL_OK")
</pallas_src>

<mosaic_0001>
module attributes {stable_mosaic.version = 11 : i64} {
  func.func @_linear_kernel(%arg0: i32, %arg1: memref<16x16xbf16, #tpu.memory_space<vmem>>, %arg2: memref<16x32xbf16, #tpu.memory_space<vmem>>, %arg3: memref<1x32xf32, #tpu.memory_space<vmem>>, %arg4: memref<16x32xbf16, #tpu.memory_space<vmem>>) attributes {dimension_semantics = [#tpu.dimension_semantics<parallel>], iteration_bounds = array<i64: 1>, scalar_prefetch = 0 : i64, scratch_operands = 0 : i64, tpu.core_type = #tpu.core_type<tc>, window_params = [{transform_indices = @transform_0, window_bounds = array<i64: 16, 16>}, {pipeline_mode = #tpu.pipeline_mode<synchronous>, transform_indices = @transform_1, window_bounds = array<i64: 16, 32>}, {pipeline_mode = #tpu.pipeline_mode<synchronous>, transform_indices = @transform_2, window_bounds = array<i64: 1, 32>}, {transform_indices = @transform_3, window_bounds = array<i64: 16, 32>}]} {
    %c0 = arith.constant 0 : index
    %c0_0 = arith.constant 0 : index
    %0 = vector.load %arg1[%c0, %c0_0] : memref<16x16xbf16, #tpu.memory_space<vmem>>, vector<16x16xbf16>
    %c0_1 = arith.constant 0 : index
    %c0_2 = arith.constant 0 : index
    %1 = vector.load %arg2[%c0_1, %c0_2] : memref<16x32xbf16, #tpu.memory_space<vmem>>, vector<16x32xbf16>
    %cst = arith.constant dense<0.000000e+00> : vector<16x32xf32>
    %2 = tpu.matmul %0, %1, %cst {dimension_numbers = #tpu.dot_dimension_numbers<[1], [0], [0], [1], [0, 0, 1, 1], [], []>} : vector<16x16xbf16>, vector<16x32xbf16>, vector<16x32xf32> -> vector<16x32xf32>
    %c0_3 = arith.constant 0 : index
    %c0_4 = arith.constant 0 : index
    %3 = vector.load %arg3[%c0_3, %c0_4] : memref<1x32xf32, #tpu.memory_space<vmem>>, vector<1x32xf32>
    %4 = vector.broadcast %3 : vector<1x32xf32> to vector<16x32xf32>
    %5 = arith.addf %2, %4 : vector<16x32xf32>
    %6 = arith.truncf %5 : vector<16x32xf32> to vector<16x32xbf16>
    %c0_5 = arith.constant 0 : index
    %c0_6 = arith.constant 0 : index
    %7 = vector.load %arg4[%c0_5, %c0_6] : memref<16x32xbf16, #tpu.memory_space<vmem>>, vector<16x32xbf16>
    tpu.vector_store %arg4[%c0_5, %c0_6], %6 {strides = array<i32>} : memref<16x32xbf16, #tpu.memory_space<vmem>>, vector<16x32xbf16>,
    return
  }
  func.func @transform_0(%arg0: i32) -> (i32, i32) {
    %c0_i32 = arith.constant 0 : i32
    %c0_i32_0 = arith.constant 0 : i32
    return %arg0, %c0_i32 : i32, i32
  }
  func.func @transform_1(%arg0: i32) -> (i32, i32) {
    %c0_i32 = arith.constant 0 : i32
    %c0_i32_0 = arith.constant 0 : i32
    %c0_i32_1 = arith.constant 0 : i32
    return %c0_i32, %c0_i32_0 : i32, i32
  }
  func.func @transform_2(%arg0: i32) -> (i32, i32) {
    %c0_i32 = arith.constant 0 : i32
    %c0_i32_0 = arith.constant 0 : i32
    %c0_i32_1 = arith.constant 0 : i32
    return %c0_i32, %c0_i32_0 : i32, i32
  }
  func.func @transform_3(%arg0: i32) -> (i32, i32) {
    %c0_i32 = arith.constant 0 : i32
    %c0_i32_0 = arith.constant 0 : i32
    return %arg0, %c0_i32 : i32, i32
  }
}

</mosaic_0001>

<llo_original>
// kernel: tpu_custom_call.1
$region0: #{tpu_custom_call.1}
  #allocation0 [shape = 'u32[]', space=smem, size = 0x4, offset = 0x4, fixed_abs, tag = 'smem constant byte address 0x4 - core index']
  #allocation1 [shape = 'u32[72,128]{1,0:T(1,128)}', space=vmem, size = 0x9000, scoped, tag = 'internal scratch']
  %s0 = inlined_call_operand.hbm [shape: bf16[16,16], index: 0, kind: input, shape index: {}]
  %s1 = inlined_call_operand.hbm [shape: bf16[16,32], index: 1, kind: input, shape index: {}]
  %s2 = inlined_call_operand.vmem [shape: f32[1,32], index: 2, kind: input, shape index: {}]
  %s3 = inlined_call_operand.hbm [shape: bf16[16,32], index: 3, kind: output, shape index: {}]
  %s4 = sld [smem:[#allocation0]]
  $region30: #{tpu_custom_call.1} parent=0
    _
  %s6 = ssub.s32 1, %s4
  %s7 = scalar_select 0, %s6, %s4
  $region1: #{tpu_custom_call.1} parent=0
    #allocation2 [shape = 'u8[4096]{0}', space=vmem, size = 0x1000, scoped, tag = 'input window, operand 0, single buffered']
    #allocation3 [shape = 's32[1]{0}', space=sflag, size = 0x4, scoped, tag = 'scoped memory for tpu_custom_call.1']
    #allocation4 [shape = 's32[1]{0}', space=sflag, size = 0x4, scoped, tag = 'scoped memory for tpu_custom_call.1']
    #allocation5 [shape = 'u8[4096]{0}', space=vmem, size = 0x1000, scoped, tag = 'input window, operand 1, single buffered']
    #allocation6 [shape = 's32[1]{0}', space=sflag, size = 0x4, scoped, tag = 'scoped memory for tpu_custom_call.1']
    #allocation7 [shape = 'u8[4096]{0}', space=vmem, size = 0x1000, scoped, tag = 'output window, operand 0, single buffered']
    %8 = vsyncpa [#allocation3], 0
    %9 = vsyncpa [#allocation6], 0
    %10 = vsyncpa [#allocation4], 0
    // Predicated region
    $region2: #{tpu_custom_call.1} parent=1 // pred_check
      _
    $region3: #{tpu_custom_call.1} parent=1 // pred_check_branch
      %12 = sbr.rel (0) target = $region5
    $region4: #{tpu_custom_call.1} parent=1 // pred_region
      %14 = vsyncadd [#allocation3], 0
      %s15 = sshll.u32 %s0, 4
      %s16 = int_to_ptr.hbm [resolvable:$true] %s15
      %s17 = sshll.u32 [#allocation2], 4
      %s18 = int_to_ptr.vmem [resolvable:$true] %s17
      %23 = dma.hbm_to_vmem [thread:$0]  %s16, 128, %s18, [#allocation3], 64, 64, 4
    $region5: #{tpu_custom_call.1} parent=1 // pred_fallthru
      _
    // Predicated region
    $region6: #{tpu_custom_call.1} parent=1 // pred_check
      _
    $region7: #{tpu_custom_call.1} parent=1 // pred_check_branch
      %25 = sbr.rel (0) target = $region9
    $region8: #{tpu_custom_call.1} parent=1 // pred_region
      %27 = vsyncadd [#allocation6], 0
      %s28 = sshll.u32 %s1, 4
      %s29 = int_to_ptr.hbm [resolvable:$true] %s28
      %s30 = sshll.u32 [#allocation5], 4
      %s31 = int_to_ptr.vmem [resolvable:$true] %s30
      %36 = dma.hbm_to_vmem [thread:$0]  %s29, 128, %s31, [#allocation6], 64, 64, 4
    $region9: #{tpu_custom_call.1} parent=1 // pred_fallthru
      _
    // Predicated region
    $region10: #{tpu_custom_call.1} parent=1 // pred_check
      _
    $region11: #{tpu_custom_call.1} parent=1 // pred_check_branch
      %38 = sbr.rel (0) target = $region13
    $region12: #{tpu_custom_call.1} parent=1 // pred_region
      _
    $region13: #{tpu_custom_call.1} parent=1 // pred_fallthru
      _
    // Predicated region
    $region14: #{tpu_custom_call.1} parent=1 // pred_check
      _
    $region15: #{tpu_custom_call.1} parent=1 // pred_check_branch
      %40 = sbr.rel (0) target = $region17
    $region16: #{tpu_custom_call.1} parent=1 // pred_region
      %42 = dma.done [#allocation3], 128
    $region17: #{tpu_custom_call.1} parent=1 // pred_fallthru
      _
    // Predicated region
    $region18: #{tpu_custom_call.1} parent=1 // pred_check
      _
    $region19: #{tpu_custom_call.1} parent=1 // pred_check_branch
      %44 = sbr.rel (0) target = $region21
    $region20: #{tpu_custom_call.1} parent=1 // pred_region
      %46 = dma.done [#allocation6], 128
    $region21: #{tpu_custom_call.1} parent=1 // pred_fallthru
      _
    %v48 = vld [vmem:[#allocation2] sm:$0xf]
    %v49 = vld [vmem:[#allocation2 + $0x4] sm:$0xf]
    %v50 = vld [vmem:[#allocation5] sm:$0xf]
    %v51 = vld [vmem:[#allocation5 + $0x4] sm:$0xf]
    %v52 = vld [vmem:[%s2] sm:$0x1]
    %v54 = vperm.slane %v52, 0
    %v58 = vunpack.c.l.b16 %v48
    %v59 = vunpack.c.l.b16 %v49
    %v60 = vpack.c.b16 %v59, %v58
    %v63 = vunpack.c.l.b16 %v50
    %v64 = vunpack.c.l.b16 %v51
    %v65 = vpack.c.b16 %v64, %v63
    %vm67 = vcmask 130048
    %v69 = vsel %vm67, %v60, 0
    %71 = vmatpush.bf16.msra.mxu0 0
    %72 = vmatpush.bf16.msra.mxu0 0
    %73 = vmatpush.bf16.msra.mxu0 0
    %74 = vmatpush.bf16.msra.mxu0 0
    %75 = vmatpush.bf16.msra.mxu0 0
    %76 = vmatpush.bf16.msra.mxu0 0
    %77 = vmatpush.bf16.msra.mxu0 0
    %78 = vmatpush.bf16.msra.mxu0 %v65
    %79 = vmatmul.bf16.gmra.mxu0 %v69
    %v80 = vpop.f32.mrf.mxu0
    %v81 = vadd.f32 %v54, %v80
    %v82 = vpop.f32.mrf.mxu0
    %v83 = vadd.f32 %v54, %v82
    %84 = vdwg.mxu0
    %v85 = vpack.c.bf16 %v81, %v81
    %v86 = vpack.c.bf16 %v83, %v83
    %vm87 = vcmask 257024
    %88 = vst.msk [vmem:[#allocation7] sm:$0xf] %vm87, %v85
    %89 = vst.msk [vmem:[#allocation7 + $0x4] sm:$0xf] %vm87, %v86
    // Predicated region
    $region22: #{tpu_custom_call.1} parent=1 // pred_check
      _
    $region23: #{tpu_custom_call.1} parent=1 // pred_check_branch
      %91 = sbr.rel (0) target = $region25
    $region24: #{tpu_custom_call.1} parent=1 // pred_region
      %93 = vsyncadd [#allocation4], 0
      %s94 = sshll.u32 [#allocation7], 4
      %s95 = int_to_ptr.vmem [resolvable:$true] %s94
      %s96 = sshll.u32 %s3, 4
      %s97 = int_to_ptr.hbm [resolvable:$true] %s96
      %102 = dma.vmem_to_hbm [thread:$0]  %s95, 128, %s97, [#allocation4], 64, 64, 4
    $region25: #{tpu_custom_call.1} parent=1 // pred_fallthru
      _
    // Predicated region
    $region26: #{tpu_custom_call.1} parent=1 // pred_check
      _
    $region27: #{tpu_custom_call.1} parent=1 // pred_check_branch
      %104 = sbr.rel (0) target = $region29
    $region28: #{tpu_custom_call.1} parent=1 // pred_region
      %106 = dma.done [#allocation4], 128
    $region29: #{tpu_custom_call.1} parent=1 // pred_fallthru
      _
    %107 = vsyncpa [#allocation3], 1
    %108 = vsyncpa [#allocation6], 1
    %109 = vsyncpa [#allocation4], 1

</llo_original>
